<compile_context>
chip_gen: v6e
topology: v6e:2x2x1
jax: 0.10.0
libtpu: 0.0.40
codegen_flags: <defaults>
</compile_context>

<pallas_src>
import functools

import jax
import jax.numpy as jnp
from jax import lax
from jax.experimental import pallas as pl
from jax.experimental.pallas import tpu as pltpu


def _round_up(x, m):
    return (x + m - 1) // m * m


def _default_max_tile_b():
    """Per-generation batch-tile default (amortize ~0.35us fixed per-grid-step)."""
    kind = ""
    try:
        kind = jax.devices()[0].device_kind.lower()
    except Exception:
        pass
    if "v5 lite" in kind or "v5e" in kind or "v5lite" in kind:
        return 1024     # ~820 GB/s HBM: step overhead already <10% at 1024
    if "v7" in kind:
        return 4096     # ~3.2 TB/s HBM: larger tiles needed to hide step overhead
    return 2048         # v6e and other/unknown parts


# ---------------------------------------------------------------------------
# Streaming path: rows pre-gathered by XLA, kernel does layer-mix + dot.
# ---------------------------------------------------------------------------
def _stream_kernel(w1_ref, w2_ref, xu_ref, xi_ref, out_ref, *, L, D):
    """One batch tile.

    w1_ref, w2_ref : (L,)      f32  SMEM (layer-mixing weights)
    xu_ref, xi_ref : (TB, L*D)      VMEM (gathered rows, f32 or bf16)
    out_ref        : (1, TB)   f32  VMEM (lane-dense predictions)
    """
    u = w1_ref[0] * xu_ref[:, 0:D].astype(jnp.float32)
    v = w2_ref[0] * xi_ref[:, 0:D].astype(jnp.float32)
    for l in range(1, L):                       # L is tiny (3) and static
        u = u + w1_ref[l] * xu_ref[:, l * D:(l + 1) * D].astype(jnp.float32)
        v = v + w2_ref[l] * xi_ref[:, l * D:(l + 1) * D].astype(jnp.float32)
    out_ref[...] = jnp.sum(u * v, axis=-1)[None, :]


def _forward_streaming(embs, ids, w1, w2, *, B, L, D, Dp, max_tile_b,
                       gather_dtype):
    itemsize = jnp.dtype(gather_dtype).itemsize
    per_row = L * Dp * itemsize
    # Keep the double-buffered two-input footprint within ~32 MiB of VMEM.
    tb_cap = max(128, ((32 * 2**20) // (4 * per_row)) // 128 * 128)
    TB = min(max_tile_b, _round_up(B, 128), tb_cap)
    TB = max(128, (TB // 128) * 128)
    B_pad = _round_up(B, TB)

    # Pad the *ids* (tiny) instead of the gathered matrices: avoids one more full
    # HBM read+write of the dominant temporaries on ragged batches.  Pad value 0
    # is a valid row index; padded predictions are sliced off below.
    if B_pad != B:
        ids = jnp.pad(ids, ((0, B_pad - B), (0, 0)))

    # Row gather stays in XLA (data-dependent).  The (B,L,Dp)->(B,L*Dp) reshape is
    # contiguous/free; per-layer D is zero-padded to a lane multiple if needed.
    # TODO(synk): mid-size tables (too big for VMEM, gather-bound): scalar-prefetch
    # ids + memory_space=pl.ANY embs + chunked make_async_copy row gathers would
    # remove the remaining HBM round-trip of these temporaries.
    Xu = embs[ids[:, 0]]
    Xi = embs[ids[:, 1]]
    if Dp != D:
        pad3 = ((0, 0), (0, 0), (0, Dp - D))
        Xu = jnp.pad(Xu, pad3)
        Xi = jnp.pad(Xi, pad3)
    Xu = Xu.reshape(B_pad, L * Dp).astype(gather_dtype)
    Xi = Xi.reshape(B_pad, L * Dp).astype(gather_dtype)

    in_bytes = 2 * 2 * TB * per_row                 # 2 inputs x 2 pipeline buffers
    vmem_limit = int(min(max(in_bytes + 16 * 2**20, 24 * 2**20), 48 * 2**20))

    flops = B_pad * (2 * L * Dp + 3 * Dp)
    bytes_accessed = 2 * B_pad * L * Dp * itemsize + B_pad * 4

    out = pl.pallas_call(
        functools.partial(_stream_kernel, L=L, D=Dp),
        out_shape=jax.ShapeDtypeStruct((1, B_pad), jnp.float32),
        grid=(B_pad // TB,),
        in_specs=[
            pl.BlockSpec(memory_space=pltpu.MemorySpace.SMEM),   # w1 (L,)
            pl.BlockSpec(memory_space=pltpu.MemorySpace.SMEM),   # w2 (L,)
            pl.BlockSpec((TB, L * Dp), lambda i: (i, 0)),        # X_u tile
            pl.BlockSpec((TB, L * Dp), lambda i: (i, 0)),        # X_i tile
        ],
        out_specs=pl.BlockSpec((1, TB), lambda i: (0, i)),
        compiler_params=pltpu.CompilerParams(
            dimension_semantics=("parallel",),
            vmem_limit_bytes=vmem_limit),
        cost_estimate=pl.CostEstimate(flops=flops, transcendentals=0,
                                      bytes_accessed=bytes_accessed),
    )(w1, w2, Xu, Xi)
    return out[0, :B]


# ---------------------------------------------------------------------------
# Fused path: table resident in VMEM, in-kernel one-hot gather on the MXU.
# ---------------------------------------------------------------------------
def _resident_kernel(w1_ref, w2_ref, ids_ref, tabT_ref, out_ref, *, L, D, N):
    """One batch tile with the gather fused into the kernel.

    w1_ref, w2_ref : (L,)      f32  SMEM
    ids_ref        : (2, TB)   i32  VMEM (row 0 = user ids, row 1 = item ids)
    tabT_ref       : (L*D, N)  f32  VMEM (transposed table; constant block index
                                          -> DMA'd once, stays resident)
    out_ref        : (1, TB)   f32  VMEM
    """
    TB = ids_ref.shape[1]

    # Layer-mix the (small) transposed table: (D, N) per side.  Cheap VPU work.
    t1 = w1_ref[0] * tabT_ref[0:D, :]
    t2 = w2_ref[0] * tabT_ref[0:D, :]
    for l in range(1, L):
        t1 = t1 + w1_ref[l] * tabT_ref[l * D:(l + 1) * D, :]
        t2 = t2 + w2_ref[l] * tabT_ref[l * D:(l + 1) * D, :]

    # One-hot selectors (N, TB); ids stay on lanes so no relayout is needed.
    ent = lax.broadcasted_iota(jnp.int32, (N, TB), 0)
    oh_u = jnp.where(ent == ids_ref[0:1, :], 1.0, 0.0).astype(jnp.bfloat16)
    oh_i = jnp.where(ent == ids_ref[1:2, :], 1.0, 0.0).astype(jnp.bfloat16)

    # Exact gather via two bf16 MXU matmuls per side (hi/lo split):
    # the one-hot lhs is exact in bf16 and each rhs component is exactly
    # bf16-representable, so the selected rows are reproduced to ~2^-17 relative
    # error independent of the default MXU matmul precision.
    def gather(mix_f32, oh_bf16):
        hi = mix_f32.astype(jnp.bfloat16)
        lo = (mix_f32 - hi.astype(jnp.float32)).astype(jnp.bfloat16)
        return (jnp.dot(hi, oh_bf16, preferred_element_type=jnp.float32)
                + jnp.dot(lo, oh_bf16, preferred_element_type=jnp.float32))

    uT = gather(t1, oh_u)        # (D, TB) f32
    vT = gather(t2, oh_i)        # (D, TB) f32
    # Sublane reduction over D -> lane-dense (1, TB) row, no transpose needed.
    out_ref[...] = jnp.sum(uT * vT, axis=0, keepdims=True)


def _forward_table_resident(embs, ids, w1, w2, *, B, N, L, D, Dp, max_tile_b):
    # One-hot/MXU cost per row scales with N, so keep the tile modest.
    TB = min(max_tile_b, 1024, _round_up(B, 128))
    TB = max(128, (TB // 128) * 128)
    B_pad = _round_up(B, TB)
    if B_pad != B:
        ids = jnp.pad(ids, ((0, B_pad - B), (0, 0)))    # pad with valid row 0
    ids_t = ids.T                                        # (2, B_pad): lane-dense blocks

    tab = embs.astype(jnp.float32)
    if Dp != D:
        tab = jnp.pad(tab, ((0, 0), (0, 0), (0, Dp - D)))
    # (N, L, Dp) -> (L*Dp, N): a one-time transpose of a *small* table so the
    # kernel's feature reduction lands on sublanes (output is lane-dense).
    tabT = tab.reshape(N, L * Dp).T

    flops = 8 * Dp * N * B_pad                   # 4 bf16 matmuls (hi/lo x 2 sides)
    bytes_accessed = tabT.size * 4 + ids_t.size * 4 + B_pad * 4

    out = pl.pallas_call(
        functools.partial(_resident_kernel, L=L, D=Dp, N=N),
        out_shape=jax.ShapeDtypeStruct((1, B_pad), jnp.float32),
        grid=(B_pad // TB,),
        in_specs=[
            pl.BlockSpec(memory_space=pltpu.MemorySpace.SMEM),   # w1 (L,)
            pl.BlockSpec(memory_space=pltpu.MemorySpace.SMEM),   # w2 (L,)
            pl.BlockSpec((2, TB), lambda i: (0, i)),             # ids tile
            pl.BlockSpec((L * Dp, N), lambda i: (0, 0)),         # resident table
        ],
        out_specs=pl.BlockSpec((1, TB), lambda i: (0, i)),
        compiler_params=pltpu.CompilerParams(
            dimension_semantics=("parallel",),
            vmem_limit_bytes=32 * 2**20),
        cost_estimate=pl.CostEstimate(flops=flops, transcendentals=0,
                                      bytes_accessed=bytes_accessed),
    )(w1, w2, ids_t, tabT)
    return out[0, :B]


# ---------------------------------------------------------------------------
# Public entry point.
# ---------------------------------------------------------------------------
def weisum_forward(embs, ids, w1, w2, *,
                   max_tile_b=None,
                   min_pallas_rows=64,
                   max_resident_rows=1024,
                   max_resident_bytes=16 * 2**20,   # v7x-safe (64 MiB VMEM) budget
                   gather_dtype=jnp.float32):
    """Pallas implementation of WeiSum.forward.

    embs: (N, L, D) embedding table (self.X);  ids: (B, 2) (user, item) pairs;
    w1, w2: the nn.Linear(3, 1, bias=False) weights (any shape with L elements).
    Returns (B,) f32 predictions.  gather_dtype=jnp.bfloat16 optionally halves the
    streaming path's HBM temporaries (looser numerics).
    """
    N, L, D = embs.shape
    B = ids.shape[0]
    w1 = jnp.asarray(w1, jnp.float32).reshape(L)
    w2 = jnp.asarray(w2, jnp.float32).reshape(L)
    ids = jnp.asarray(ids, jnp.int32)

    if B < min_pallas_rows:
        # Tiny-problem regime: pallas_call / DMA setup overhead dwarfs the data.
        Xu = embs[ids[:, 0]].astype(jnp.float32)
        Xi = embs[ids[:, 1]].astype(jnp.float32)
        u = jnp.einsum("bld,l->bd", Xu, w1)
        v = jnp.einsum("bld,l->bd", Xi, w2)
        return jnp.sum(u * v, axis=-1)

    if max_tile_b is None:
        max_tile_b = _default_max_tile_b()

    # Per-layer feature dim padded to a lane multiple so all in-kernel slices are
    # (8,128)-aligned; zero features do not change the inner product.
    Dp = _round_up(D, 128)

    table_bytes = N * L * Dp * 4
    if N <= max_resident_rows and table_bytes <= max_resident_bytes:
        return _forward_table_resident(embs, ids, w1, w2, B=B, N=N, L=L, D=D,
                                       Dp=Dp, max_tile_b=max_tile_b)
    return _forward_streaming(embs, ids, w1, w2, B=B, L=L, D=D, Dp=Dp,
                              max_tile_b=max_tile_b, gather_dtype=gather_dtype)


if __name__ == "__main__":
    key = jax.random.PRNGKey(0)
    k_emb, k_ids = jax.random.split(key)

    # Small-but-real shapes: N entities, L=3 layers (matches nn.Linear(3, 1)),
    # D features, B (user, item) pairs.  B is deliberately NOT a tile multiple
    # (exercises the padded tail) and max_tile_b=128 forces a multi-step grid.
    N, L, D, B = 64, 3, 128, 300
    embs = jax.random.normal(k_emb, (N, L, D), dtype=jnp.float32)
    ids = jax.random.randint(k_ids, (B, 2), 0, N, dtype=jnp.int32)

    # Deterministic parameter init, exactly as in __init__: [0.33, 0.33, 0.33].
    w1 = jnp.array([0.33, 0.33, 0.33], dtype=jnp.float32)
    w2 = jnp.array([0.33, 0.33, 0.33], dtype=jnp.float32)

    # Pure-JAX reference of the PyTorch semantics.
    u_ref = jnp.einsum("bld,l->bd", embs[ids[:, 0]], w1)
    i_ref = jnp.einsum("bld,l->bd", embs[ids[:, 1]], w2)
    ref = jnp.sum(u_ref * i_ref, axis=-1)

    # 1) Fused-gather path (N=64 -> table VMEM-resident, gather inside the kernel).
    pred_fused = jax.block_until_ready(
        weisum_forward(embs, ids, w1, w2, max_tile_b=128))
    assert pred_fused.shape == (B,)
    assert jnp.allclose(pred_fused, ref, atol=1e-3, rtol=1e-3), (
        float(jnp.max(jnp.abs(pred_fused - ref))))

    # 2) Streaming path (forced): XLA gather + Pallas layer-mix/dot kernel.
    pred_stream = jax.block_until_ready(
        weisum_forward(embs, ids, w1, w2, max_tile_b=128, max_resident_rows=0))
    assert pred_stream.shape == (B,)
    assert jnp.allclose(pred_stream, ref, atol=1e-4, rtol=1e-4), (
        float(jnp.max(jnp.abs(pred_stream - ref))))

    print("KERNEL_OK")
</pallas_src>

<mosaic_0001>
module attributes {stable_mosaic.version = 11 : i64} {
  func.func @_resident_kernel(%arg0: i32, %arg1: memref<3xf32, #tpu.memory_space<smem>>, %arg2: memref<3xf32, #tpu.memory_space<smem>>, %arg3: memref<2x128xi32, #tpu.memory_space<vmem>>, %arg4: memref<384x64xf32, #tpu.memory_space<vmem>>, %arg5: memref<1x128xf32, #tpu.memory_space<vmem>>) attributes {dimension_semantics = [#tpu.dimension_semantics<parallel>], iteration_bounds = array<i64: 3>, scalar_prefetch = 0 : i64, scratch_operands = 0 : i64, tpu.core_type = #tpu.core_type<tc>, window_params = [{transform_indices = @transform_0, window_bounds = array<i64: 3>}, {transform_indices = @transform_1, window_bounds = array<i64: 3>}, {transform_indices = @transform_2, window_bounds = array<i64: 2, 128>}, {pipeline_mode = #tpu.pipeline_mode<synchronous>, transform_indices = @transform_3, window_bounds = array<i64: 384, 64>}, {transform_indices = @transform_4, window_bounds = array<i64: 1, 128>}]} {
    %c0 = arith.constant 0 : index
    %0 = memref.load %arg1[%c0] : memref<3xf32, #tpu.memory_space<smem>>
    %c0_0 = arith.constant 0 : index
    %c0_1 = arith.constant 0 : index
    %1 = vector.load %arg4[%c0_0, %c0_1] : memref<384x64xf32, #tpu.memory_space<vmem>>, vector<128x64xf32>
    %2 = vector.broadcast %0 : f32 to vector<128x64xf32>
    %3 = arith.mulf %2, %1 : vector<128x64xf32>
    %c0_2 = arith.constant 0 : index
    %4 = memref.load %arg2[%c0_2] : memref<3xf32, #tpu.memory_space<smem>>
    %c0_3 = arith.constant 0 : index
    %c0_4 = arith.constant 0 : index
    %5 = vector.load %arg4[%c0_3, %c0_4] : memref<384x64xf32, #tpu.memory_space<vmem>>, vector<128x64xf32>
    %6 = vector.broadcast %4 : f32 to vector<128x64xf32>
    %7 = arith.mulf %6, %5 : vector<128x64xf32>
    %c1 = arith.constant 1 : index
    %8 = memref.load %arg1[%c1] : memref<3xf32, #tpu.memory_space<smem>>
    %c128 = arith.constant 128 : index
    %c0_5 = arith.constant 0 : index
    %9 = vector.load %arg4[%c128, %c0_5] : memref<384x64xf32, #tpu.memory_space<vmem>>, vector<128x64xf32>
    %10 = vector.broadcast %8 : f32 to vector<128x64xf32>
    %11 = arith.mulf %10, %9 : vector<128x64xf32>
    %12 = arith.addf %3, %11 : vector<128x64xf32>
    %c1_6 = arith.constant 1 : index
    %13 = memref.load %arg2[%c1_6] : memref<3xf32, #tpu.memory_space<smem>>
    %c128_7 = arith.constant 128 : index
    %c0_8 = arith.constant 0 : index
    %14 = vector.load %arg4[%c128_7, %c0_8] : memref<384x64xf32, #tpu.memory_space<vmem>>, vector<128x64xf32>
    %15 = vector.broadcast %13 : f32 to vector<128x64xf32>
    %16 = arith.mulf %15, %14 : vector<128x64xf32>
    %17 = arith.addf %7, %16 : vector<128x64xf32>
    %c2 = arith.constant 2 : index
    %18 = memref.load %arg1[%c2] : memref<3xf32, #tpu.memory_space<smem>>
    %c256 = arith.constant 256 : index
    %c0_9 = arith.constant 0 : index
    %19 = vector.load %arg4[%c256, %c0_9] : memref<384x64xf32, #tpu.memory_space<vmem>>, vector<128x64xf32>
    %20 = vector.broadcast %18 : f32 to vector<128x64xf32>
    %21 = arith.mulf %20, %19 : vector<128x64xf32>
    %22 = arith.addf %12, %21 : vector<128x64xf32>
    %c2_10 = arith.constant 2 : index
    %23 = memref.load %arg2[%c2_10] : memref<3xf32, #tpu.memory_space<smem>>
    %c256_11 = arith.constant 256 : index
    %c0_12 = arith.constant 0 : index
    %24 = vector.load %arg4[%c256_11, %c0_12] : memref<384x64xf32, #tpu.memory_space<vmem>>, vector<128x64xf32>
    %25 = vector.broadcast %23 : f32 to vector<128x64xf32>
    %26 = arith.mulf %25, %24 : vector<128x64xf32>
    %27 = arith.addf %17, %26 : vector<128x64xf32>
    %28 = tpu.iota {dimensions = array<i32: 0>} : vector<64x128xi32>
    %c0_13 = arith.constant 0 : index
    %c0_14 = arith.constant 0 : index
    %29 = vector.load %arg3[%c0_13, %c0_14] : memref<2x128xi32, #tpu.memory_space<vmem>>, vector<1x128xi32>
    %30 = vector.broadcast %29 : vector<1x128xi32> to vector<64x128xi32>
    %31 = arith.cmpi eq, %28, %30 : vector<64x128xi32>
    %cst = arith.constant 1.000000e+00 : f32
    %cst_15 = arith.constant 0.000000e+00 : f32
    %32 = vector.broadcast %cst : f32 to vector<64x128xf32>
    %33 = vector.broadcast %cst_15 : f32 to vector<64x128xf32>
    %34 = arith.select %31, %32, %33 : vector<64x128xi1>, vector<64x128xf32>
    %35 = arith.truncf %34 : vector<64x128xf32> to vector<64x128xbf16>
    %c1_16 = arith.constant 1 : index
    %c0_17 = arith.constant 0 : index
    %36 = vector.load %arg3[%c1_16, %c0_17] : memref<2x128xi32, #tpu.memory_space<vmem>>, vector<1x128xi32>
    %37 = vector.broadcast %36 : vector<1x128xi32> to vector<64x128xi32>
    %38 = arith.cmpi eq, %28, %37 : vector<64x128xi32>
    %cst_18 = arith.constant 1.000000e+00 : f32
    %cst_19 = arith.constant 0.000000e+00 : f32
    %39 = vector.broadcast %cst_18 : f32 to vector<64x128xf32>
    %40 = vector.broadcast %cst_19 : f32 to vector<64x128xf32>
    %41 = arith.select %38, %39, %40 : vector<64x128xi1>, vector<64x128xf32>
    %42 = arith.truncf %41 : vector<64x128xf32> to vector<64x128xbf16>
    %43 = arith.truncf %22 : vector<128x64xf32> to vector<128x64xbf16>
    %44 = arith.extf %43 : vector<128x64xbf16> to vector<128x64xf32>
    %45 = arith.subf %22, %44 : vector<128x64xf32>
    %46 = arith.truncf %45 : vector<128x64xf32> to vector<128x64xbf16>
    %cst_20 = arith.constant dense<0.000000e+00> : vector<128x128xf32>
    %47 = tpu.matmul %43, %35, %cst_20 {dimension_numbers = #tpu.dot_dimension_numbers<[1], [0], [0], [1], [0, 0, 1, 1], [], []>} : vector<128x64xbf16>, vector<64x128xbf16>, vector<128x128xf32> -> vector<128x128xf32>
    %cst_21 = arith.constant dense<0.000000e+00> : vector<128x128xf32>
    %48 = tpu.matmul %46, %35, %cst_21 {dimension_numbers = #tpu.dot_dimension_numbers<[1], [0], [0], [1], [0, 0, 1, 1], [], []>} : vector<128x64xbf16>, vector<64x128xbf16>, vector<128x128xf32> -> vector<128x128xf32>
    %49 = arith.addf %47, %48 : vector<128x128xf32>
    %50 = arith.truncf %27 : vector<128x64xf32> to vector<128x64xbf16>
    %51 = arith.extf %50 : vector<128x64xbf16> to vector<128x64xf32>
    %52 = arith.subf %27, %51 : vector<128x64xf32>
    %53 = arith.truncf %52 : vector<128x64xf32> to vector<128x64xbf16>
    %cst_22 = arith.constant dense<0.000000e+00> : vector<128x128xf32>
    %54 = tpu.matmul %50, %42, %cst_22 {dimension_numbers = #tpu.dot_dimension_numbers<[1], [0], [0], [1], [0, 0, 1, 1], [], []>} : vector<128x64xbf16>, vector<64x128xbf16>, vector<128x128xf32> -> vector<128x128xf32>
    %cst_23 = arith.constant dense<0.000000e+00> : vector<128x128xf32>
    %55 = tpu.matmul %53, %42, %cst_23 {dimension_numbers = #tpu.dot_dimension_numbers<[1], [0], [0], [1], [0, 0, 1, 1], [], []>} : vector<128x64xbf16>, vector<64x128xbf16>, vector<128x128xf32> -> vector<128x128xf32>
    %56 = arith.addf %54, %55 : vector<128x128xf32>
    %57 = arith.mulf %49, %56 : vector<128x128xf32>
    %cst_24 = arith.constant dense<0.000000e+00> : vector<128xf32>
    %58 = vector.multi_reduction <add>, %57, %cst_24 [0] : vector<128x128xf32> to vector<128xf32>
    %59 = vector.shape_cast %58 : vector<128xf32> to vector<1x128xf32>
    %c0_25 = arith.constant 0 : index
    %c0_26 = arith.constant 0 : index
    %60 = vector.load %arg5[%c0_25, %c0_26] : memref<1x128xf32, #tpu.memory_space<vmem>>, vector<1x128xf32>
    tpu.vector_store %arg5[%c0_25, %c0_26], %59 {strides = array<i32>} : memref<1x128xf32, #tpu.memory_space<vmem>>, vector<1x128xf32>,
    return
  }
  func.func @transform_0(%arg0: i32) -> i32 {
    %c0_i32 = arith.constant 0 : i32
    %c0_i32_0 = arith.constant 0 : i32
    return %c0_i32 : i32
  }
  func.func @transform_1(%arg0: i32) -> i32 {
    %c0_i32 = arith.constant 0 : i32
    %c0_i32_0 = arith.constant 0 : i32
    return %c0_i32 : i32
  }
  func.func @transform_2(%arg0: i32) -> (i32, i32) {
    %c0_i32 = arith.constant 0 : i32
    %c0_i32_0 = arith.constant 0 : i32
    return %c0_i32, %arg0 : i32, i32
  }
  func.func @transform_3(%arg0: i32) -> (i32, i32) {
    %c0_i32 = arith.constant 0 : i32
    %c0_i32_0 = arith.constant 0 : i32
    %c0_i32_1 = arith.constant 0 : i32
    return %c0_i32, %c0_i32_0 : i32, i32
  }
  func.func @transform_4(%arg0: i32) -> (i32, i32) {
    %c0_i32 = arith.constant 0 : i32
    %c0_i32_0 = arith.constant 0 : i32
    return %c0_i32, %arg0 : i32, i32
  }
}

</mosaic_0001>

<llo_original>
// kernel: tpu_custom_call.1
$region0: #{tpu_custom_call.1}
  #allocation0 [shape = 'u32[]', space=smem, size = 0x4, offset = 0x4, fixed_abs, tag = 'smem constant byte address 0x4 - core index']
  #allocation1 [shape = 'u32[144,128]{1,0:T(1,128)}', space=vmem, size = 0x12000, scoped, tag = 'internal scratch']
  %s0 = inlined_call_operand.vmem [shape: f32[3], index: 0, kind: input, shape index: {}]
  %s1 = inlined_call_operand.vmem [shape: f32[3], index: 1, kind: input, shape index: {}]
  %s2 = inlined_call_operand.vmem [shape: s32[2,384], index: 2, kind: input, shape index: {}]
  %s3 = inlined_call_operand.vmem [shape: f32[384,64], index: 3, kind: input, shape index: {}]
  %s4 = inlined_call_operand.hbm [shape: f32[1,384], index: 4, kind: output, shape index: {}]
  %s5 = sld [smem:[#allocation0]]
  $region57: #{tpu_custom_call.1} parent=0
    _
  %s7 = ssub.s32 1, %s5
  %s8 = scalar_select 0, %s7, %s5
  $region1: #{tpu_custom_call.1} parent=0
    #allocation2 [shape = 'u8[512]{0}', space=smem, size = 0x200, scoped, tag = 'input window, operand 0, single buffered']
    #allocation3 [shape = 's32[2]{0}', space=sflag, size = 0x8, scoped, tag = 'scoped memory for tpu_custom_call.1']
    #allocation4 [shape = 's32[2]{0}', space=sflag, size = 0x8, scoped, tag = 'scoped memory for tpu_custom_call.1']
    #allocation5 [shape = 'u8[512]{0}', space=smem, size = 0x200, scoped, tag = 'input window, operand 1, single buffered']
    #allocation6 [shape = 's32[1]{0}', space=sflag, size = 0x4, scoped, tag = 'scoped memory for tpu_custom_call.1']
    #allocation7 [shape = 'u8[1024]{0}', space=vmem, size = 0x400, scoped, tag = 'output window, operand 0']
    %9 = vsyncpa [#allocation4], 0
    %10 = vsyncpa [#allocation6], 0
    %11 = vsyncpa [#allocation3], 0
    %s12 = scalar_lea.sflag [#allocation3], 1
    %13 = vsyncpa %s12, 0
    loop: start=0, step=1, limit=5
    $region2: #{tpu_custom_call.1} parent=1 // loop_pre_header
      _
    $region3: #{tpu_custom_call.1} parent=1 // loop_header
      %s15 = sphi 0, %s19
      %p16 = scmp.ge.s32.totalorder %s15, 5
      %s23 = sphi 0, %s23
      %s25 = sphi 0, %s23
      %s26 = sphi 0, %s25
      %s40 = sphi 0, %s26
      %s44 = sphi 0, %s44
      %s46 = sphi 0, %s44
      %s47 = sphi 0, %s46
      %s61 = sphi 0, %s47
      %s67 = sphi 0, %s69
      %s70 = sphi 0, %s67
      %s71 = sphi 0, %s70
      %s87 = sphi 0, %s71
      %s91 = sphi 0, %s91
      %s93 = sphi 0, %s91
      %s94 = sphi 0, %s93
      %s108 = sphi 0, %s94
      %s114 = sphi 0, %s116
      %s117 = sphi 0, %s114
      %s118 = sphi 0, %s117
      %s134 = sphi 0, %s118
    $region4: #{tpu_custom_call.1} parent=1 // loop_header_branch
      %18 = sbr.rel (%p16) target = $region8
    $region5: #{tpu_custom_call.1} parent=1 // loop_body
      %s20 = ssub.s32 %s15, 1
      %s21 = ssub.s32 %s15, 2
      %s22 = sadd.s32 %s15, 1
      %s24 = sadd.s32 %s23, 1
      %p27 = scmp.eq.s32.totalorder %s15, 2
      %p28 = scmp.ne.s32.totalorder %s23, %s25
      %p29 = scmp.eq.s32.totalorder %s15, 0
      %p30 = por %p28, %p29
      %p31 = scmp.ne.s32.totalorder %s23, %s25
      %p32 = scmp.eq.s32.totalorder %s20, 2
      %p33 = por %p31, %p32
      %p34 = scmp.ne.s32.totalorder %s25, %s26
      %p35 = scmp.eq.s32.totalorder %s20, 0
      %p36 = por %p34, %p35
      %p37 = scmp.ne.s32.totalorder %s25, %s26
      %p38 = scmp.eq.s32.totalorder %s21, 2
      %p39 = por %p37, %p38
      %p41 = scmp.ne.s32.totalorder %s26, %s40
      %p42 = scmp.eq.s32.totalorder %s21, 0
      %p43 = por %p41, %p42
      %s45 = sadd.s32 %s44, 1
      %p48 = scmp.eq.s32.totalorder %s15, 2
      %p49 = scmp.ne.s32.totalorder %s44, %s46
      %p50 = scmp.eq.s32.totalorder %s15, 0
      %p51 = por %p49, %p50
      %p52 = scmp.ne.s32.totalorder %s44, %s46
      %p53 = scmp.eq.s32.totalorder %s20, 2
      %p54 = por %p52, %p53
      %p55 = scmp.ne.s32.totalorder %s46, %s47
      %p56 = scmp.eq.s32.totalorder %s20, 0
      %p57 = por %p55, %p56
      %p58 = scmp.ne.s32.totalorder %s46, %s47
      %p59 = scmp.eq.s32.totalorder %s21, 2
      %p60 = por %p58, %p59
      %p62 = scmp.ne.s32.totalorder %s47, %s61
      %p63 = scmp.eq.s32.totalorder %s21, 0
      %p64 = por %p62, %p63
      %s65 = ssub.s32 %s15, %s22
      %p66 = scmp.eq.s32.totalorder %s65, 0
      %s68 = sadd.s32 %s67, 1
      %s69 = scalar_select %p66, %s67, %s68
      %p72 = pneg %p66
      %p73 = scmp.eq.s32.totalorder %s15, 2
      %p74 = por %p72, %p73
      %p75 = scmp.ne.s32.totalorder %s67, %s70
      %p76 = scmp.eq.s32.totalorder %s15, 0
      %p77 = por %p75, %p76
      %p78 = scmp.ne.s32.totalorder %s67, %s70
      %p79 = scmp.eq.s32.totalorder %s20, 2
      %p80 = por %p78, %p79
      %p81 = scmp.ne.s32.totalorder %s70, %s71
      %p82 = scmp.eq.s32.totalorder %s20, 0
      %p83 = por %p81, %p82
      %p84 = scmp.ne.s32.totalorder %s70, %s71
      %p85 = scmp.eq.s32.totalorder %s21, 2
      %p86 = por %p84, %p85
      %p88 = scmp.ne.s32.totalorder %s71, %s87
      %p89 = scmp.eq.s32.totalorder %s21, 0
      %p90 = por %p88, %p89
      %s92 = sadd.s32 %s91, 1
      %p95 = scmp.eq.s32.totalorder %s15, 2
      %p96 = scmp.ne.s32.totalorder %s91, %s93
      %p97 = scmp.eq.s32.totalorder %s15, 0
      %p98 = por %p96, %p97
      %p99 = scmp.ne.s32.totalorder %s91, %s93
      %p100 = scmp.eq.s32.totalorder %s20, 2
      %p101 = por %p99, %p100
      %p102 = scmp.ne.s32.totalorder %s93, %s94
      %p103 = scmp.eq.s32.totalorder %s20, 0
      %p104 = por %p102, %p103
      %p105 = scmp.ne.s32.totalorder %s93, %s94
      %p106 = scmp.eq.s32.totalorder %s21, 2
      %p107 = por %p105, %p106
      %p109 = scmp.ne.s32.totalorder %s94, %s108
      %p110 = scmp.eq.s32.totalorder %s21, 0
      %p111 = por %p109, %p110
      %s112 = ssub.s32 %s15, %s22
      %p113 = scmp.eq.s32.totalorder %s112, 0
      %s115 = sadd.s32 %s114, 1
      %s116 = scalar_select %p113, %s114, %s115
      %p119 = pneg %p113
      %p120 = scmp.eq.s32.totalorder %s15, 2
      %p121 = por %p119, %p120
      %p122 = scmp.ne.s32.totalorder %s114, %s117
      %p123 = scmp.eq.s32.totalorder %s15, 0
      %p124 = por %p122, %p123
      %p125 = scmp.ne.s32.totalorder %s114, %s117
      %p126 = scmp.eq.s32.totalorder %s20, 2
      %p127 = por %p125, %p126
      %p128 = scmp.ne.s32.totalorder %s117, %s118
      %p129 = scmp.eq.s32.totalorder %s20, 0
      %p130 = por %p128, %p129
      %p131 = scmp.ne.s32.totalorder %s117, %s118
      %p132 = scmp.eq.s32.totalorder %s21, 2
      %p133 = por %p131, %p132
      %p135 = scmp.ne.s32.totalorder %s118, %s134
      %p136 = scmp.eq.s32.totalorder %s21, 0
      %p137 = por %p135, %p136
      %p138 = scmp.le.s32.totalorder 1, %s15
      %p139 = scmp.lt.s32.totalorder %s15, 4
      %p140 = pnand %p138, %p139
      %p141 = pneg %p140
      // Predicated region
      $region9: #{tpu_custom_call.1} parent=5 // pred_check
        _
      $region10: #{tpu_custom_call.1} parent=5 // pred_check_branch
        %143 = sbr.rel (%p140) target = $region12
      $region11: #{tpu_custom_call.1} parent=5 // pred_region
        %s144 = ssub.s32 %s15, 1
        // Predicated region
        $region13: #{tpu_custom_call.1} parent=11 // pred_check
          %p145 = pneg %p36
        $region14: #{tpu_custom_call.1} parent=11 // pred_check_branch
          %147 = sbr.rel (%p145) target = $region16
        $region15: #{tpu_custom_call.1} parent=11 // pred_region
          %s149 = ssub.s32 16, 16
          %150 = vsyncadd [#allocation4], %s149
          %s152 = sshll.u32 %s0, 4
          %s153 = int_to_ptr.vmem [resolvable:$true] %s152
          %155 = dma.vmem_to_smem %s153, 16, [#allocation2], [#allocation4]
        $region16: #{tpu_custom_call.1} parent=11 // pred_fallthru
          _
        // Predicated region
        $region17: #{tpu_custom_call.1} parent=11 // pred_check
          %p156 = pneg %p57
        $region18: #{tpu_custom_call.1} parent=11 // pred_check_branch
          %158 = sbr.rel (%p156) target = $region20
        $region19: #{tpu_custom_call.1} parent=11 // pred_region
          %s160 = ssub.s32 16, 16
          %161 = vsyncadd [#allocation6], %s160
          %s163 = sshll.u32 %s1, 4
          %s164 = int_to_ptr.vmem [resolvable:$true] %s163
          %166 = dma.vmem_to_smem %s164, 16, [#allocation5], [#allocation6]
        $region20: #{tpu_custom_call.1} parent=11 // pred_fallthru
          _
        // Predicated region
        $region21: #{tpu_custom_call.1} parent=11 // pred_check
          %p167 = pneg %p104
        $region22: #{tpu_custom_call.1} parent=11 // pred_check_branch
          %169 = sbr.rel (%p167) target = $region24
        $region23: #{tpu_custom_call.1} parent=11 // pred_region
          _
        $region24: #{tpu_custom_call.1} parent=11 // pred_fallthru
          _
      $region12: #{tpu_custom_call.1} parent=5 // pred_fallthru
        _
      %p170 = scmp.lt.s32.totalorder %s15, 3
      // Predicated region
      $region25: #{tpu_custom_call.1} parent=5 // pred_check
        %p171 = pneg %p170
      $region26: #{tpu_custom_call.1} parent=5 // pred_check_branch
        %173 = sbr.rel (%p171) target = $region28
      $region27: #{tpu_custom_call.1} parent=5 // pred_region
        // Predicated region
        $region29: #{tpu_custom_call.1} parent=27 // pred_check
          %p174 = pneg %p77
        $region30: #{tpu_custom_call.1} parent=27 // pred_check_branch
          %176 = sbr.rel (%p174) target = $region32
        $region31: #{tpu_custom_call.1} parent=27 // pred_region
          %p177 = scmp.lt.s32.totalorder %s15, 2
          %s178 = scalar_select %p177, %s15, 2
          %s179 = smul.addr %s178, 2
          %s180 = scalar_lea.vmem %s2, %s179
        $region32: #{tpu_custom_call.1} parent=27 // pred_fallthru
          _
      $region28: #{tpu_custom_call.1} parent=5 // pred_fallthru
        _
      %p181 = scmp.le.s32.totalorder 1, %s15
      %p182 = scmp.lt.s32.totalorder %s15, 4
      %p183 = pnand %p181, %p182
      %p184 = pneg %p183
      // Predicated region
      $region33: #{tpu_custom_call.1} parent=5 // pred_check
        _
      $region34: #{tpu_custom_call.1} parent=5 // pred_check_branch
        %186 = sbr.rel (%p183) target = $region36
      $region35: #{tpu_custom_call.1} parent=5 // pred_region
        %s187 = ssub.s32 %s15, 1
        // Predicated region
        $region37: #{tpu_custom_call.1} parent=35 // pred_check
          %p188 = pneg %p36
        $region38: #{tpu_custom_call.1} parent=35 // pred_check_branch
          %190 = sbr.rel (%p188) target = $region40
        $region39: #{tpu_custom_call.1} parent=35 // pred_region
          %191 = dma.done [#allocation4], 16
        $region40: #{tpu_custom_call.1} parent=35 // pred_fallthru
          _
        // Predicated region
        $region41: #{tpu_custom_call.1} parent=35 // pred_check
          %p192 = pneg %p57
        $region42: #{tpu_custom_call.1} parent=35 // pred_check_branch
          %194 = sbr.rel (%p192) target = $region44
        $region43: #{tpu_custom_call.1} parent=35 // pred_region
          %195 = dma.done [#allocation6], 16
        $region44: #{tpu_custom_call.1} parent=35 // pred_fallthru
          _
        %196 = sfence
        %p197 = pneg %p36
        %p198 = pneg %p33
        %p199 = pneg %p57
        %p200 = pneg %p54
        %p201 = scmp.lt.s32.totalorder %s20, 2
        %s202 = scalar_select %p201, %s20, 2
        %s203 = smul.addr %s202, 2
        %s204 = scalar_lea.vmem %s2, %s203
        %p205 = pneg %p83
        %p206 = pneg %p80
        %p207 = pneg %p104
        %p208 = pneg %p101
        %p209 = pneg %p130
        %p210 = pneg %p127
        %s211 = sand.u32 %s117, 1
        %s212 = scalar_lea.sflag [#allocation3], %s211
        %s213 = sand.u32 %s117, 1
        %s214 = scalar_lea.vmem [#allocation7], %s213
        %p215 = scmp.lt.s32.totalorder %s20, 2
        %s216 = scalar_select %p215, %s20, 2
        %s217 = smul.addr %s216, 2
        %s218 = scalar_lea.vmem %s2, %s217
        %s220 = sld [smem:[#allocation2]]
        %v221 = vld [vmem:[%s3] sm:$0xff]
        %v222 = vld [vmem:[%s3 + $0x8] sm:$0xff]
        %v223 = vld [vmem:[%s3 + $0x10] sm:$0xff]
        %v224 = vld [vmem:[%s3 + $0x18] sm:$0xff]
        %v225 = vld [vmem:[%s3 + $0x20] sm:$0xff]
        %v226 = vld [vmem:[%s3 + $0x28] sm:$0xff]
        %v227 = vld [vmem:[%s3 + $0x30] sm:$0xff]
        %v228 = vld [vmem:[%s3 + $0x38] sm:$0xff]
        %v229 = vld [vmem:[%s3 + $0x40] sm:$0xff]
        %v230 = vld [vmem:[%s3 + $0x48] sm:$0xff]
        %v231 = vld [vmem:[%s3 + $0x50] sm:$0xff]
        %v232 = vld [vmem:[%s3 + $0x58] sm:$0xff]
        %v233 = vld [vmem:[%s3 + $0x60] sm:$0xff]
        %v234 = vld [vmem:[%s3 + $0x68] sm:$0xff]
        %v235 = vld [vmem:[%s3 + $0x70] sm:$0xff]
        %v236 = vld [vmem:[%s3 + $0x78] sm:$0xff]
        %v237 = vstv %s220
        %v238 = vmul.f32 %v237, %v221
        %v239 = vmul.f32 %v237, %v222
        %v240 = vmul.f32 %v237, %v223
        %v241 = vmul.f32 %v237, %v224
        %v242 = vmul.f32 %v237, %v225
        %v243 = vmul.f32 %v237, %v226
        %v244 = vmul.f32 %v237, %v227
        %v245 = vmul.f32 %v237, %v228
        %v246 = vmul.f32 %v237, %v229
        %v247 = vmul.f32 %v237, %v230
        %v248 = vmul.f32 %v237, %v231
        %v249 = vmul.f32 %v237, %v232
        %v250 = vmul.f32 %v237, %v233
        %v251 = vmul.f32 %v237, %v234
        %v252 = vmul.f32 %v237, %v235
        %v253 = vmul.f32 %v237, %v236
        %s254 = sld [smem:[#allocation5]]
        %v255 = vstv %s254
        %v256 = vmul.f32 %v255, %v221
        %v257 = vmul.f32 %v255, %v222
        %v258 = vmul.f32 %v255, %v223
        %v259 = vmul.f32 %v255, %v224
        %v260 = vmul.f32 %v255, %v225
        %v261 = vmul.f32 %v255, %v226
        %v262 = vmul.f32 %v255, %v227
        %v263 = vmul.f32 %v255, %v228
        %v264 = vmul.f32 %v255, %v229
        %v265 = vmul.f32 %v255, %v230
        %v266 = vmul.f32 %v255, %v231
        %v267 = vmul.f32 %v255, %v232
        %v268 = vmul.f32 %v255, %v233
        %v269 = vmul.f32 %v255, %v234
        %v270 = vmul.f32 %v255, %v235
        %v271 = vmul.f32 %v255, %v236
        %s272 = sld [smem:[#allocation2 + $0x1]]
        %v273 = vld [vmem:[%s3 + $0x80] sm:$0xff]
        %v274 = vld [vmem:[%s3 + $0x88] sm:$0xff]
        %v275 = vld [vmem:[%s3 + $0x90] sm:$0xff]
        %v276 = vld [vmem:[%s3 + $0x98] sm:$0xff]
        %v277 = vld [vmem:[%s3 + $0xa0] sm:$0xff]
        %v278 = vld [vmem:[%s3 + $0xa8] sm:$0xff]
        %v279 = vld [vmem:[%s3 + $0xb0] sm:$0xff]
        %v280 = vld [vmem:[%s3 + $0xb8] sm:$0xff]
        %v281 = vld [vmem:[%s3 + $0xc0] sm:$0xff]
        %v282 = vld [vmem:[%s3 + $0xc8] sm:$0xff]
        %v283 = vld [vmem:[%s3 + $0xd0] sm:$0xff]
        %v284 = vld [vmem:[%s3 + $0xd8] sm:$0xff]
        %v285 = vld [vmem:[%s3 + $0xe0] sm:$0xff]
        %v286 = vld [vmem:[%s3 + $0xe8] sm:$0xff]
        %v287 = vld [vmem:[%s3 + $0xf0] sm:$0xff]
        %v288 = vld [vmem:[%s3 + $0xf8] sm:$0xff]
        %v289 = vstv %s272
        %v290 = vmul.f32 %v289, %v273
        %v291 = vmul.f32 %v289, %v274
        %v292 = vmul.f32 %v289, %v275
        %v293 = vmul.f32 %v289, %v276
        %v294 = vmul.f32 %v289, %v277
        %v295 = vmul.f32 %v289, %v278
        %v296 = vmul.f32 %v289, %v279
        %v297 = vmul.f32 %v289, %v280
        %v298 = vmul.f32 %v289, %v281
        %v299 = vmul.f32 %v289, %v282
        %v300 = vmul.f32 %v289, %v283
        %v301 = vmul.f32 %v289, %v284
        %v302 = vmul.f32 %v289, %v285
        %v303 = vmul.f32 %v289, %v286
        %v304 = vmul.f32 %v289, %v287
        %v305 = vmul.f32 %v289, %v288
        %v306 = vadd.f32 %v238, %v290
        %v307 = vadd.f32 %v239, %v291
        %v308 = vadd.f32 %v240, %v292
        %v309 = vadd.f32 %v241, %v293
        %v310 = vadd.f32 %v242, %v294
        %v311 = vadd.f32 %v243, %v295
        %v312 = vadd.f32 %v244, %v296
        %v313 = vadd.f32 %v245, %v297
        %v314 = vadd.f32 %v246, %v298
        %v315 = vadd.f32 %v247, %v299
        %v316 = vadd.f32 %v248, %v300
        %v317 = vadd.f32 %v249, %v301
        %v318 = vadd.f32 %v250, %v302
        %v319 = vadd.f32 %v251, %v303
        %v320 = vadd.f32 %v252, %v304
        %v321 = vadd.f32 %v253, %v305
        %s322 = sld [smem:[#allocation5 + $0x1]]
        %v323 = vstv %s322
        %v324 = vmul.f32 %v323, %v273
        %v325 = vmul.f32 %v323, %v274
        %v326 = vmul.f32 %v323, %v275
        %v327 = vmul.f32 %v323, %v276
        %v328 = vmul.f32 %v323, %v277
        %v329 = vmul.f32 %v323, %v278
        %v330 = vmul.f32 %v323, %v279
        %v331 = vmul.f32 %v323, %v280
        %v332 = vmul.f32 %v323, %v281
        %v333 = vmul.f32 %v323, %v282
        %v334 = vmul.f32 %v323, %v283
        %v335 = vmul.f32 %v323, %v284
        %v336 = vmul.f32 %v323, %v285
        %v337 = vmul.f32 %v323, %v286
        %v338 = vmul.f32 %v323, %v287
        %v339 = vmul.f32 %v323, %v288
        %v340 = vadd.f32 %v256, %v324
        %v341 = vadd.f32 %v257, %v325
        %v342 = vadd.f32 %v258, %v326
        %v343 = vadd.f32 %v259, %v327
        %v344 = vadd.f32 %v260, %v328
        %v345 = vadd.f32 %v261, %v329
        %v346 = vadd.f32 %v262, %v330
        %v347 = vadd.f32 %v263, %v331
        %v348 = vadd.f32 %v264, %v332
        %v349 = vadd.f32 %v265, %v333
        %v350 = vadd.f32 %v266, %v334
        %v351 = vadd.f32 %v267, %v335
        %v352 = vadd.f32 %v268, %v336
        %v353 = vadd.f32 %v269, %v337
        %v354 = vadd.f32 %v270, %v338
        %v355 = vadd.f32 %v271, %v339
        %s356 = sld [smem:[#allocation2 + $0x2]]
        %v357 = vld [vmem:[%s3 + $0x100] sm:$0xff]
        %v358 = vld [vmem:[%s3 + $0x108] sm:$0xff]
        %v359 = vld [vmem:[%s3 + $0x110] sm:$0xff]
        %v360 = vld [vmem:[%s3 + $0x118] sm:$0xff]
        %v361 = vld [vmem:[%s3 + $0x120] sm:$0xff]
        %v362 = vld [vmem:[%s3 + $0x128] sm:$0xff]
        %v363 = vld [vmem:[%s3 + $0x130] sm:$0xff]
        %v364 = vld [vmem:[%s3 + $0x138] sm:$0xff]
        %v365 = vld [vmem:[%s3 + $0x140] sm:$0xff]
        %v366 = vld [vmem:[%s3 + $0x148] sm:$0xff]
        %v367 = vld [vmem:[%s3 + $0x150] sm:$0xff]
        %v368 = vld [vmem:[%s3 + $0x158] sm:$0xff]
        %v369 = vld [vmem:[%s3 + $0x160] sm:$0xff]
        %v370 = vld [vmem:[%s3 + $0x168] sm:$0xff]
        %v371 = vld [vmem:[%s3 + $0x170] sm:$0xff]
        %v372 = vld [vmem:[%s3 + $0x178] sm:$0xff]
        %v373 = vstv %s356
        %v374 = vmul.f32 %v373, %v357
        %v375 = vmul.f32 %v373, %v358
        %v376 = vmul.f32 %v373, %v359
        %v377 = vmul.f32 %v373, %v360
        %v378 = vmul.f32 %v373, %v361
        %v379 = vmul.f32 %v373, %v362
        %v380 = vmul.f32 %v373, %v363
        %v381 = vmul.f32 %v373, %v364
        %v382 = vmul.f32 %v373, %v365
        %v383 = vmul.f32 %v373, %v366
        %v384 = vmul.f32 %v373, %v367
        %v385 = vmul.f32 %v373, %v368
        %v386 = vmul.f32 %v373, %v369
        %v387 = vmul.f32 %v373, %v370
        %v388 = vmul.f32 %v373, %v371
        %v389 = vmul.f32 %v373, %v372
        %v390 = vadd.f32 %v306, %v374
        %v391 = vadd.f32 %v307, %v375
        %v392 = vadd.f32 %v308, %v376
        %v393 = vadd.f32 %v309, %v377
        %v394 = vadd.f32 %v310, %v378
        %v395 = vadd.f32 %v311, %v379
        %v396 = vadd.f32 %v312, %v380
        %v397 = vadd.f32 %v313, %v381
        %v398 = vadd.f32 %v314, %v382
        %v399 = vadd.f32 %v315, %v383
        %v400 = vadd.f32 %v316, %v384
        %v401 = vadd.f32 %v317, %v385
        %v402 = vadd.f32 %v318, %v386
        %v403 = vadd.f32 %v319, %v387
        %v404 = vadd.f32 %v320, %v388
        %v405 = vadd.f32 %v321, %v389
        %s406 = sld [smem:[#allocation5 + $0x2]]
        %v407 = vstv %s406
        %v408 = vmul.f32 %v407, %v357
        %v409 = vmul.f32 %v407, %v358
        %v410 = vmul.f32 %v407, %v359
        %v411 = vmul.f32 %v407, %v360
        %v412 = vmul.f32 %v407, %v361
        %v413 = vmul.f32 %v407, %v362
        %v414 = vmul.f32 %v407, %v363
        %v415 = vmul.f32 %v407, %v364
        %v416 = vmul.f32 %v407, %v365
        %v417 = vmul.f32 %v407, %v366
        %v418 = vmul.f32 %v407, %v367
        %v419 = vmul.f32 %v407, %v368
        %v420 = vmul.f32 %v407, %v369
        %v421 = vmul.f32 %v407, %v370
        %v422 = vmul.f32 %v407, %v371
        %v423 = vmul.f32 %v407, %v372
        %v424 = vadd.f32 %v340, %v408
        %v425 = vadd.f32 %v341, %v409
        %v426 = vadd.f32 %v342, %v410
        %v427 = vadd.f32 %v343, %v411
        %v428 = vadd.f32 %v344, %v412
        %v429 = vadd.f32 %v345, %v413
        %v430 = vadd.f32 %v346, %v414
        %v431 = vadd.f32 %v347, %v415
        %v432 = vadd.f32 %v348, %v416
        %v433 = vadd.f32 %v349, %v417
        %v434 = vadd.f32 %v350, %v418
        %v435 = vadd.f32 %v351, %v419
        %v436 = vadd.f32 %v352, %v420
        %v437 = vadd.f32 %v353, %v421
        %v438 = vadd.f32 %v354, %v422
        %v439 = vadd.f32 %v355, %v423
        %v440 = vlaneseq
        %v441 = vshrl.u32 %v440, 7
        %v442 = vadd.s32 %v441, 8
        %v443 = vadd.s32 %v441, 16
        %v444 = vadd.s32 %v441, 24
        %v445 = vadd.s32 %v441, 32
        %v446 = vadd.s32 %v441, 40
        %v447 = vadd.s32 %v441, 48
        %v448 = vadd.s32 %v441, 56
        %v449 = vld [vmem:[%s218] sm:$0x1]
        %v450 = vlaneseq
        %v451 = vshrl.u32 %v450, 7
        %v452 = vsub.s32 0, %v451
        %v453 = vrot.slane %v449, %v452
        %vm454 = vcmp.eq.s32.totalorder %v441, %v453
        %vm455 = vcmp.eq.s32.totalorder %v442, %v453
        %vm456 = vcmp.eq.s32.totalorder %v443, %v453
        %vm457 = vcmp.eq.s32.totalorder %v444, %v453
        %vm458 = vcmp.eq.s32.totalorder %v445, %v453
        %vm459 = vcmp.eq.s32.totalorder %v446, %v453
        %vm460 = vcmp.eq.s32.totalorder %v447, %v453
        %vm461 = vcmp.eq.s32.totalorder %v448, %v453
        %v462 = vsel %vm454, 1.0, 0.0
        %v463 = vsel %vm455, 1.0, 0.0
        %v464 = vsel %vm456, 1.0, 0.0
        %v465 = vsel %vm457, 1.0, 0.0
        %v466 = vsel %vm458, 1.0, 0.0
        %v467 = vsel %vm459, 1.0, 0.0
        %v468 = vsel %vm460, 1.0, 0.0
        %v469 = vsel %vm461, 1.0, 0.0
        %v470 = vpack.c.bf16 %v463, %v462
        %v471 = vpack.c.bf16 %v465, %v464
        %v472 = vpack.c.bf16 %v467, %v466
        %v473 = vpack.c.bf16 %v469, %v468
        %v474 = vld [vmem:[%s218 + $0x1] sm:$0x1]
        %v475 = vlaneseq
        %v476 = vshrl.u32 %v475, 7
        %v477 = vsub.s32 0, %v476
        %v478 = vrot.slane %v474, %v477
        %vm479 = vcmp.eq.s32.totalorder %v441, %v478
        %vm480 = vcmp.eq.s32.totalorder %v442, %v478
        %vm481 = vcmp.eq.s32.totalorder %v443, %v478
        %vm482 = vcmp.eq.s32.totalorder %v444, %v478
        %vm483 = vcmp.eq.s32.totalorder %v445, %v478
        %vm484 = vcmp.eq.s32.totalorder %v446, %v478
        %vm485 = vcmp.eq.s32.totalorder %v447, %v478
        %vm486 = vcmp.eq.s32.totalorder %v448, %v478
        %v487 = vsel %vm479, 1.0, 0.0
        %v488 = vsel %vm480, 1.0, 0.0
        %v489 = vsel %vm481, 1.0, 0.0
        %v490 = vsel %vm482, 1.0, 0.0
        %v491 = vsel %vm483, 1.0, 0.0
        %v492 = vsel %vm484, 1.0, 0.0
        %v493 = vsel %vm485, 1.0, 0.0
        %v494 = vsel %vm486, 1.0, 0.0
        %v495 = vpack.c.bf16 %v488, %v487
        %v496 = vpack.c.bf16 %v490, %v489
        %v497 = vpack.c.bf16 %v492, %v491
        %v498 = vpack.c.bf16 %v494, %v493
        %v499 = vpack.c.bf16 %v391, %v390
        %v500 = vpack.c.bf16 %v393, %v392
        %v501 = vpack.c.bf16 %v395, %v394
        %v502 = vpack.c.bf16 %v397, %v396
        %v503 = vpack.c.bf16 %v399, %v398
        %v504 = vpack.c.bf16 %v401, %v400
        %v505 = vpack.c.bf16 %v403, %v402
        %v506 = vpack.c.bf16 %v405, %v404
        %v507 = vunpack.c.l.bf16 %v499
        %v508 = vunpack.c.h.bf16 %v499
        %v509 = vunpack.c.l.bf16 %v500
        %v510 = vunpack.c.h.bf16 %v500
        %v511 = vunpack.c.l.bf16 %v501
        %v512 = vunpack.c.h.bf16 %v501
        %v513 = vunpack.c.l.bf16 %v502
        %v514 = vunpack.c.h.bf16 %v502
        %v515 = vunpack.c.l.bf16 %v503
        %v516 = vunpack.c.h.bf16 %v503
        %v517 = vunpack.c.l.bf16 %v504
        %v518 = vunpack.c.h.bf16 %v504
        %v519 = vunpack.c.l.bf16 %v505
        %v520 = vunpack.c.h.bf16 %v505
        %v521 = vunpack.c.l.bf16 %v506
        %v522 = vunpack.c.h.bf16 %v506
        %v523 = vsub.f32 %v390, %v507
        %v524 = vsub.f32 %v391, %v508
        %v525 = vsub.f32 %v392, %v509
        %v526 = vsub.f32 %v393, %v510
        %v527 = vsub.f32 %v394, %v511
        %v528 = vsub.f32 %v395, %v512
        %v529 = vsub.f32 %v396, %v513
        %v530 = vsub.f32 %v397, %v514
        %v531 = vsub.f32 %v398, %v515
        %v532 = vsub.f32 %v399, %v516
        %v533 = vsub.f32 %v400, %v517
        %v534 = vsub.f32 %v401, %v518
        %v535 = vsub.f32 %v402, %v519
        %v536 = vsub.f32 %v403, %v520
        %v537 = vsub.f32 %v404, %v521
        %v538 = vsub.f32 %v405, %v522
        %v539 = vpack.c.bf16 %v524, %v523
        %v540 = vpack.c.bf16 %v526, %v525
        %v541 = vpack.c.bf16 %v528, %v527
        %v542 = vpack.c.bf16 %v530, %v529
        %v543 = vpack.c.bf16 %v532, %v531
        %v544 = vpack.c.bf16 %v534, %v533
        %v545 = vpack.c.bf16 %v536, %v535
        %v546 = vpack.c.bf16 %v538, %v537
        %vm547 = vcmask 523264
        %v549 = vsel %vm547, %v539, 0
        %v552 = vsel %vm547, %v540, 0
        %v555 = vsel %vm547, %v541, 0
        %v558 = vsel %vm547, %v542, 0
        %v561 = vsel %vm547, %v543, 0
        %v564 = vsel %vm547, %v544, 0
        %v567 = vsel %vm547, %v545, 0
        %v570 = vsel %vm547, %v546, 0
        %572 = vmatprep.subr.bf16.mxu0 0
        %573 = vmatpush1.bf16.msra.mxu0 0
        %574 = vmatprep.subr.bf16.mxu0 0
        %575 = vmatpush1.bf16.msra.mxu0 0
        %576 = vmatprep.subr.bf16.mxu0 0
        %577 = vmatpush1.bf16.msra.mxu0 0
        %578 = vmatprep.subr.bf16.mxu0 0
        %579 = vmatpush1.bf16.msra.mxu0 0
        %580 = vmatprep.subr.bf16.mxu0 0
        %581 = vmatpush1.bf16.msra.mxu0 %v473
        %582 = vmatprep.subr.bf16.mxu0 0
        %583 = vmatpush1.bf16.msra.mxu0 %v472
        %584 = vmatprep.subr.bf16.mxu0 0
        %585 = vmatpush1.bf16.msra.mxu0 %v471
        %586 = vmatprep.subr.bf16.mxu0 0
        %587 = vmatpush1.bf16.msra.mxu0 %v470
        %588 = vmatprep.subr.bf16.mxu0 0
        %589 = vmatpush2.bf16.msra.mxu0 0
        %590 = vmatprep.subr.bf16.mxu0 0
        %591 = vmatpush2.bf16.msra.mxu0 0
        %592 = vmatprep.subr.bf16.mxu0 0
        %593 = vmatpush2.bf16.msra.mxu0 0
        %594 = vmatprep.subr.bf16.mxu0 0
        %595 = vmatpush2.bf16.msra.mxu0 0
        %596 = vmatprep.subr.bf16.mxu0 0
        %597 = vmatpush2.bf16.msra.mxu0 0
        %598 = vmatprep.subr.bf16.mxu0 0
        %599 = vmatpush2.bf16.msra.mxu0 0
        %600 = vmatprep.subr.bf16.mxu0 0
        %601 = vmatpush2.bf16.msra.mxu0 0
        %602 = vmatprep.subr.bf16.mxu0 0
        %603 = vmatpush2.bf16.msra.mxu0 0
        %604 = vmatprep.mubr.bf16.mxu0 0
        %605 = vmatmul.mubr.bf16.gmra.mxu0 %v549
        %v606 = vpop.f32.mrf.mxu0
        %v607 = vadd.f32 0.0, %v606
        %v608 = vpop.f32.mrf.mxu0
        %v609 = vpop.f32.mrf.mxu0
        %v610 = vadd.f32 0.0, %v609
        %v611 = vpop.f32.mrf.mxu0
        %612 = vmatprep.mubr.bf16.mxu0 0
        %613 = vmatmul.mubr.bf16.gmra.mxu0 %v552
        %v614 = vpop.f32.mrf.mxu0
        %v615 = vadd.f32 0.0, %v614
        %v616 = vpop.f32.mrf.mxu0
        %v617 = vpop.f32.mrf.mxu0
        %v618 = vadd.f32 0.0, %v617
        %v619 = vpop.f32.mrf.mxu0
        %620 = vmatprep.mubr.bf16.mxu0 0
        %621 = vmatmul.mubr.bf16.gmra.mxu0 %v555
        %v622 = vpop.f32.mrf.mxu0
        %v623 = vadd.f32 0.0, %v622
        %v624 = vpop.f32.mrf.mxu0
        %v625 = vpop.f32.mrf.mxu0
        %v626 = vadd.f32 0.0, %v625
        %v627 = vpop.f32.mrf.mxu0
        %628 = vmatprep.mubr.bf16.mxu0 0
        %629 = vmatmul.mubr.bf16.gmra.mxu0 %v558
        %v630 = vpop.f32.mrf.mxu0
        %v631 = vadd.f32 0.0, %v630
        %v632 = vpop.f32.mrf.mxu0
        %v633 = vpop.f32.mrf.mxu0
        %v634 = vadd.f32 0.0, %v633
        %v635 = vpop.f32.mrf.mxu0
        %636 = vmatprep.mubr.bf16.mxu0 0
        %637 = vmatmul.mubr.bf16.gmra.mxu0 %v561
        %v638 = vpop.f32.mrf.mxu0
        %v639 = vadd.f32 0.0, %v638
        %v640 = vpop.f32.mrf.mxu0
        %v641 = vpop.f32.mrf.mxu0
        %v642 = vadd.f32 0.0, %v641
        %v643 = vpop.f32.mrf.mxu0
        %644 = vmatprep.mubr.bf16.mxu0 0
        %645 = vmatmul.mubr.bf16.gmra.mxu0 %v564
        %v646 = vpop.f32.mrf.mxu0
        %v647 = vadd.f32 0.0, %v646
        %v648 = vpop.f32.mrf.mxu0
        %v649 = vpop.f32.mrf.mxu0
        %v650 = vadd.f32 0.0, %v649
        %v651 = vpop.f32.mrf.mxu0
        %652 = vmatprep.mubr.bf16.mxu0 0
        %653 = vmatmul.mubr.bf16.gmra.mxu0 %v567
        %v654 = vpop.f32.mrf.mxu0
        %v655 = vadd.f32 0.0, %v654
        %v656 = vpop.f32.mrf.mxu0
        %v657 = vpop.f32.mrf.mxu0
        %v658 = vadd.f32 0.0, %v657
        %v659 = vpop.f32.mrf.mxu0
        %660 = vmatprep.mubr.bf16.mxu0 0
        %661 = vmatmul.mubr.bf16.gmra.mxu0 %v570
        %v662 = vpop.f32.mrf.mxu0
        %v663 = vadd.f32 0.0, %v662
        %v664 = vpop.f32.mrf.mxu0
        %v665 = vpop.f32.mrf.mxu0
        %v666 = vadd.f32 0.0, %v665
        %v667 = vpop.f32.mrf.mxu0
        %668 = vdwg.mxu0
        %v670 = vsel %vm547, %v499, 0
        %v673 = vsel %vm547, %v500, 0
        %v676 = vsel %vm547, %v501, 0
        %v679 = vsel %vm547, %v502, 0
        %v682 = vsel %vm547, %v503, 0
        %v685 = vsel %vm547, %v504, 0
        %v688 = vsel %vm547, %v505, 0
        %v691 = vsel %vm547, %v506, 0
        %693 = vmatprep.subr.bf16.mxu0 0
        %694 = vmatpush1.bf16.msra.mxu0 0
        %695 = vmatprep.subr.bf16.mxu0 0
        %696 = vmatpush1.bf16.msra.mxu0 0
        %697 = vmatprep.subr.bf16.mxu0 0
        %698 = vmatpush1.bf16.msra.mxu0 0
        %699 = vmatprep.subr.bf16.mxu0 0
        %700 = vmatpush1.bf16.msra.mxu0 0
        %701 = vmatprep.subr.bf16.mxu0 0
        %702 = vmatpush1.bf16.msra.mxu0 %v473
        %703 = vmatprep.subr.bf16.mxu0 0
        %704 = vmatpush1.bf16.msra.mxu0 %v472
        %705 = vmatprep.subr.bf16.mxu0 0
        %706 = vmatpush1.bf16.msra.mxu0 %v471
        %707 = vmatprep.subr.bf16.mxu0 0
        %708 = vmatpush1.bf16.msra.mxu0 %v470
        %709 = vmatprep.subr.bf16.mxu0 0
        %710 = vmatpush2.bf16.msra.mxu0 0
        %711 = vmatprep.subr.bf16.mxu0 0
        %712 = vmatpush2.bf16.msra.mxu0 0
        %713 = vmatprep.subr.bf16.mxu0 0
        %714 = vmatpush2.bf16.msra.mxu0 0
        %715 = vmatprep.subr.bf16.mxu0 0
        %716 = vmatpush2.bf16.msra.mxu0 0
        %717 = vmatprep.subr.bf16.mxu0 0
        %718 = vmatpush2.bf16.msra.mxu0 0
        %719 = vmatprep.subr.bf16.mxu0 0
        %720 = vmatpush2.bf16.msra.mxu0 0
        %721 = vmatprep.subr.bf16.mxu0 0
        %722 = vmatpush2.bf16.msra.mxu0 0
        %723 = vmatprep.subr.bf16.mxu0 0
        %724 = vmatpush2.bf16.msra.mxu0 0
        %725 = vmatprep.mubr.bf16.mxu0 0
        %726 = vmatmul.mubr.bf16.gmra.mxu0 %v670
        %v727 = vpop.f32.mrf.mxu0
        %v728 = vadd.f32 %v607, %v727
        %v729 = vpop.f32.mrf.mxu0
        %v730 = vpop.f32.mrf.mxu0
        %v731 = vadd.f32 %v610, %v730
        %v732 = vpop.f32.mrf.mxu0
        %733 = vmatprep.mubr.bf16.mxu0 0
        %734 = vmatmul.mubr.bf16.gmra.mxu0 %v673
        %v735 = vpop.f32.mrf.mxu0
        %v736 = vadd.f32 %v615, %v735
        %v737 = vpop.f32.mrf.mxu0
        %v738 = vpop.f32.mrf.mxu0
        %v739 = vadd.f32 %v618, %v738
        %v740 = vpop.f32.mrf.mxu0
        %741 = vmatprep.mubr.bf16.mxu0 0
        %742 = vmatmul.mubr.bf16.gmra.mxu0 %v676
        %v743 = vpop.f32.mrf.mxu0
        %v744 = vadd.f32 %v623, %v743
        %v745 = vpop.f32.mrf.mxu0
        %v746 = vpop.f32.mrf.mxu0
        %v747 = vadd.f32 %v626, %v746
        %v748 = vpop.f32.mrf.mxu0
        %749 = vmatprep.mubr.bf16.mxu0 0
        %750 = vmatmul.mubr.bf16.gmra.mxu0 %v679
        %v751 = vpop.f32.mrf.mxu0
        %v752 = vadd.f32 %v631, %v751
        %v753 = vpop.f32.mrf.mxu0
        %v754 = vpop.f32.mrf.mxu0
        %v755 = vadd.f32 %v634, %v754
        %v756 = vpop.f32.mrf.mxu0
        %757 = vmatprep.mubr.bf16.mxu0 0
        %758 = vmatmul.mubr.bf16.gmra.mxu0 %v682
        %v759 = vpop.f32.mrf.mxu0
        %v760 = vadd.f32 %v639, %v759
        %v761 = vpop.f32.mrf.mxu0
        %v762 = vpop.f32.mrf.mxu0
        %v763 = vadd.f32 %v642, %v762
        %v764 = vpop.f32.mrf.mxu0
        %765 = vmatprep.mubr.bf16.mxu0 0
        %766 = vmatmul.mubr.bf16.gmra.mxu0 %v685
        %v767 = vpop.f32.mrf.mxu0
        %v768 = vadd.f32 %v647, %v767
        %v769 = vpop.f32.mrf.mxu0
        %v770 = vpop.f32.mrf.mxu0
        %v771 = vadd.f32 %v650, %v770
        %v772 = vpop.f32.mrf.mxu0
        %773 = vmatprep.mubr.bf16.mxu0 0
        %774 = vmatmul.mubr.bf16.gmra.mxu0 %v688
        %v775 = vpop.f32.mrf.mxu0
        %v776 = vadd.f32 %v655, %v775
        %v777 = vpop.f32.mrf.mxu0
        %v778 = vpop.f32.mrf.mxu0
        %v779 = vadd.f32 %v658, %v778
        %v780 = vpop.f32.mrf.mxu0
        %781 = vmatprep.mubr.bf16.mxu0 0
        %782 = vmatmul.mubr.bf16.gmra.mxu0 %v691
        %v783 = vpop.f32.mrf.mxu0
        %v784 = vadd.f32 %v663, %v783
        %v785 = vpop.f32.mrf.mxu0
        %v786 = vpop.f32.mrf.mxu0
        %v787 = vadd.f32 %v666, %v786
        %v788 = vpop.f32.mrf.mxu0
        %789 = vdwg.mxu0
        %v790 = vpack.c.bf16 %v425, %v424
        %v791 = vpack.c.bf16 %v427, %v426
        %v792 = vpack.c.bf16 %v429, %v428
        %v793 = vpack.c.bf16 %v431, %v430
        %v794 = vpack.c.bf16 %v433, %v432
        %v795 = vpack.c.bf16 %v435, %v434
        %v796 = vpack.c.bf16 %v437, %v436
        %v797 = vpack.c.bf16 %v439, %v438
        %v798 = vunpack.c.l.bf16 %v790
        %v799 = vunpack.c.h.bf16 %v790
        %v800 = vunpack.c.l.bf16 %v791
        %v801 = vunpack.c.h.bf16 %v791
        %v802 = vunpack.c.l.bf16 %v792
        %v803 = vunpack.c.h.bf16 %v792
        %v804 = vunpack.c.l.bf16 %v793
        %v805 = vunpack.c.h.bf16 %v793
        %v806 = vunpack.c.l.bf16 %v794
        %v807 = vunpack.c.h.bf16 %v794
        %v808 = vunpack.c.l.bf16 %v795
        %v809 = vunpack.c.h.bf16 %v795
        %v810 = vunpack.c.l.bf16 %v796
        %v811 = vunpack.c.h.bf16 %v796
        %v812 = vunpack.c.l.bf16 %v797
        %v813 = vunpack.c.h.bf16 %v797
        %v814 = vsub.f32 %v424, %v798
        %v815 = vsub.f32 %v425, %v799
        %v816 = vsub.f32 %v426, %v800
        %v817 = vsub.f32 %v427, %v801
        %v818 = vsub.f32 %v428, %v802
        %v819 = vsub.f32 %v429, %v803
        %v820 = vsub.f32 %v430, %v804
        %v821 = vsub.f32 %v431, %v805
        %v822 = vsub.f32 %v432, %v806
        %v823 = vsub.f32 %v433, %v807
        %v824 = vsub.f32 %v434, %v808
        %v825 = vsub.f32 %v435, %v809
        %v826 = vsub.f32 %v436, %v810
        %v827 = vsub.f32 %v437, %v811
        %v828 = vsub.f32 %v438, %v812
        %v829 = vsub.f32 %v439, %v813
        %v830 = vpack.c.bf16 %v815, %v814
        %v831 = vpack.c.bf16 %v817, %v816
        %v832 = vpack.c.bf16 %v819, %v818
        %v833 = vpack.c.bf16 %v821, %v820
        %v834 = vpack.c.bf16 %v823, %v822
        %v835 = vpack.c.bf16 %v825, %v824
        %v836 = vpack.c.bf16 %v827, %v826
        %v837 = vpack.c.bf16 %v829, %v828
        %v839 = vsel %vm547, %v830, 0
        %v842 = vsel %vm547, %v831, 0
        %v845 = vsel %vm547, %v832, 0
        %v848 = vsel %vm547, %v833, 0
        %v851 = vsel %vm547, %v834, 0
        %v854 = vsel %vm547, %v835, 0
        %v857 = vsel %vm547, %v836, 0
        %v860 = vsel %vm547, %v837, 0
        %862 = vmatprep.subr.bf16.mxu0 0
        %863 = vmatpush1.bf16.msra.mxu0 0
        %864 = vmatprep.subr.bf16.mxu0 0
        %865 = vmatpush1.bf16.msra.mxu0 0
        %866 = vmatprep.subr.bf16.mxu0 0
        %867 = vmatpush1.bf16.msra.mxu0 0
        %868 = vmatprep.subr.bf16.mxu0 0
        %869 = vmatpush1.bf16.msra.mxu0 0
        %870 = vmatprep.subr.bf16.mxu0 0
        %871 = vmatpush1.bf16.msra.mxu0 %v498
        %872 = vmatprep.subr.bf16.mxu0 0
        %873 = vmatpush1.bf16.msra.mxu0 %v497
        %874 = vmatprep.subr.bf16.mxu0 0
        %875 = vmatpush1.bf16.msra.mxu0 %v496
        %876 = vmatprep.subr.bf16.mxu0 0
        %877 = vmatpush1.bf16.msra.mxu0 %v495
        %878 = vmatprep.subr.bf16.mxu0 0
        %879 = vmatpush2.bf16.msra.mxu0 0
        %880 = vmatprep.subr.bf16.mxu0 0
        %881 = vmatpush2.bf16.msra.mxu0 0
        %882 = vmatprep.subr.bf16.mxu0 0
        %883 = vmatpush2.bf16.msra.mxu0 0
        %884 = vmatprep.subr.bf16.mxu0 0
        %885 = vmatpush2.bf16.msra.mxu0 0
        %886 = vmatprep.subr.bf16.mxu0 0
        %887 = vmatpush2.bf16.msra.mxu0 0
        %888 = vmatprep.subr.bf16.mxu0 0
        %889 = vmatpush2.bf16.msra.mxu0 0
        %890 = vmatprep.subr.bf16.mxu0 0
        %891 = vmatpush2.bf16.msra.mxu0 0
        %892 = vmatprep.subr.bf16.mxu0 0
        %893 = vmatpush2.bf16.msra.mxu0 0
        %894 = vmatprep.mubr.bf16.mxu0 0
        %895 = vmatmul.mubr.bf16.gmra.mxu0 %v839
        %v896 = vpop.f32.mrf.mxu0
        %v897 = vadd.f32 0.0, %v896
        %v898 = vpop.f32.mrf.mxu0
        %v899 = vpop.f32.mrf.mxu0
        %v900 = vadd.f32 0.0, %v899
        %v901 = vpop.f32.mrf.mxu0
        %902 = vmatprep.mubr.bf16.mxu0 0
        %903 = vmatmul.mubr.bf16.gmra.mxu0 %v842
        %v904 = vpop.f32.mrf.mxu0
        %v905 = vadd.f32 0.0, %v904
        %v906 = vpop.f32.mrf.mxu0
        %v907 = vpop.f32.mrf.mxu0
        %v908 = vadd.f32 0.0, %v907
        %v909 = vpop.f32.mrf.mxu0
        %910 = vmatprep.mubr.bf16.mxu0 0
        %911 = vmatmul.mubr.bf16.gmra.mxu0 %v845
        %v912 = vpop.f32.mrf.mxu0
        %v913 = vadd.f32 0.0, %v912
        %v914 = vpop.f32.mrf.mxu0
        %v915 = vpop.f32.mrf.mxu0
        %v916 = vadd.f32 0.0, %v915
        %v917 = vpop.f32.mrf.mxu0
        %918 = vmatprep.mubr.bf16.mxu0 0
        %919 = vmatmul.mubr.bf16.gmra.mxu0 %v848
        %v920 = vpop.f32.mrf.mxu0
        %v921 = vadd.f32 0.0, %v920
        %v922 = vpop.f32.mrf.mxu0
        %v923 = vpop.f32.mrf.mxu0
        %v924 = vadd.f32 0.0, %v923
        %v925 = vpop.f32.mrf.mxu0
        %926 = vmatprep.mubr.bf16.mxu0 0
        %927 = vmatmul.mubr.bf16.gmra.mxu0 %v851
        %v928 = vpop.f32.mrf.mxu0
        %v929 = vadd.f32 0.0, %v928
        %v930 = vpop.f32.mrf.mxu0
        %v931 = vpop.f32.mrf.mxu0
        %v932 = vadd.f32 0.0, %v931
        %v933 = vpop.f32.mrf.mxu0
        %934 = vmatprep.mubr.bf16.mxu0 0
        %935 = vmatmul.mubr.bf16.gmra.mxu0 %v854
        %v936 = vpop.f32.mrf.mxu0
        %v937 = vadd.f32 0.0, %v936
        %v938 = vpop.f32.mrf.mxu0
        %v939 = vpop.f32.mrf.mxu0
        %v940 = vadd.f32 0.0, %v939
        %v941 = vpop.f32.mrf.mxu0
        %942 = vmatprep.mubr.bf16.mxu0 0
        %943 = vmatmul.mubr.bf16.gmra.mxu0 %v857
        %v944 = vpop.f32.mrf.mxu0
        %v945 = vadd.f32 0.0, %v944
        %v946 = vpop.f32.mrf.mxu0
        %v947 = vpop.f32.mrf.mxu0
        %v948 = vadd.f32 0.0, %v947
        %v949 = vpop.f32.mrf.mxu0
        %950 = vmatprep.mubr.bf16.mxu0 0
        %951 = vmatmul.mubr.bf16.gmra.mxu0 %v860
        %v952 = vpop.f32.mrf.mxu0
        %v953 = vadd.f32 0.0, %v952
        %v954 = vpop.f32.mrf.mxu0
        %v955 = vpop.f32.mrf.mxu0
        %v956 = vadd.f32 0.0, %v955
        %v957 = vpop.f32.mrf.mxu0
        %958 = vdwg.mxu0
        %v960 = vsel %vm547, %v790, 0
        %v963 = vsel %vm547, %v791, 0
        %v966 = vsel %vm547, %v792, 0
        %v969 = vsel %vm547, %v793, 0
        %v972 = vsel %vm547, %v794, 0
        %v975 = vsel %vm547, %v795, 0
        %v978 = vsel %vm547, %v796, 0
        %v981 = vsel %vm547, %v797, 0
        %983 = vmatprep.subr.bf16.mxu0 0
        %984 = vmatpush1.bf16.msra.mxu0 0
        %985 = vmatprep.subr.bf16.mxu0 0
        %986 = vmatpush1.bf16.msra.mxu0 0
        %987 = vmatprep.subr.bf16.mxu0 0
        %988 = vmatpush1.bf16.msra.mxu0 0
        %989 = vmatprep.subr.bf16.mxu0 0
        %990 = vmatpush1.bf16.msra.mxu0 0
        %991 = vmatprep.subr.bf16.mxu0 0
        %992 = vmatpush1.bf16.msra.mxu0 %v498
        %993 = vmatprep.subr.bf16.mxu0 0
        %994 = vmatpush1.bf16.msra.mxu0 %v497
        %995 = vmatprep.subr.bf16.mxu0 0
        %996 = vmatpush1.bf16.msra.mxu0 %v496
        %997 = vmatprep.subr.bf16.mxu0 0
        %998 = vmatpush1.bf16.msra.mxu0 %v495
        %999 = vmatprep.subr.bf16.mxu0 0
        %1000 = vmatpush2.bf16.msra.mxu0 0
        %1001 = vmatprep.subr.bf16.mxu0 0
        %1002 = vmatpush2.bf16.msra.mxu0 0
        %1003 = vmatprep.subr.bf16.mxu0 0
        %1004 = vmatpush2.bf16.msra.mxu0 0
        %1005 = vmatprep.subr.bf16.mxu0 0
        %1006 = vmatpush2.bf16.msra.mxu0 0
        %1007 = vmatprep.subr.bf16.mxu0 0
        %1008 = vmatpush2.bf16.msra.mxu0 0
        %1009 = vmatprep.subr.bf16.mxu0 0
        %1010 = vmatpush2.bf16.msra.mxu0 0
        %1011 = vmatprep.subr.bf16.mxu0 0
        %1012 = vmatpush2.bf16.msra.mxu0 0
        %1013 = vmatprep.subr.bf16.mxu0 0
        %1014 = vmatpush2.bf16.msra.mxu0 0
        %1015 = vmatprep.mubr.bf16.mxu0 0
        %1016 = vmatmul.mubr.bf16.gmra.mxu0 %v960
        %v1017 = vpop.f32.mrf.mxu0
        %v1018 = vadd.f32 %v897, %v1017
        %v1019 = vpop.f32.mrf.mxu0
        %v1020 = vpop.f32.mrf.mxu0
        %v1021 = vadd.f32 %v900, %v1020
        %v1022 = vpop.f32.mrf.mxu0
        %1023 = vmatprep.mubr.bf16.mxu0 0
        %1024 = vmatmul.mubr.bf16.gmra.mxu0 %v963
        %v1025 = vpop.f32.mrf.mxu0
        %v1026 = vadd.f32 %v905, %v1025
        %v1027 = vpop.f32.mrf.mxu0
        %v1028 = vpop.f32.mrf.mxu0
        %v1029 = vadd.f32 %v908, %v1028
        %v1030 = vpop.f32.mrf.mxu0
        %1031 = vmatprep.mubr.bf16.mxu0 0
        %1032 = vmatmul.mubr.bf16.gmra.mxu0 %v966
        %v1033 = vpop.f32.mrf.mxu0
        %v1034 = vadd.f32 %v913, %v1033
        %v1035 = vpop.f32.mrf.mxu0
        %v1036 = vpop.f32.mrf.mxu0
        %v1037 = vadd.f32 %v916, %v1036
        %v1038 = vpop.f32.mrf.mxu0
        %1039 = vmatprep.mubr.bf16.mxu0 0
        %1040 = vmatmul.mubr.bf16.gmra.mxu0 %v969
        %v1041 = vpop.f32.mrf.mxu0
        %v1042 = vadd.f32 %v921, %v1041
        %v1043 = vpop.f32.mrf.mxu0
        %v1044 = vpop.f32.mrf.mxu0
        %v1045 = vadd.f32 %v924, %v1044
        %v1046 = vpop.f32.mrf.mxu0
        %1047 = vmatprep.mubr.bf16.mxu0 0
        %1048 = vmatmul.mubr.bf16.gmra.mxu0 %v972
        %v1049 = vpop.f32.mrf.mxu0
        %v1050 = vadd.f32 %v929, %v1049
        %v1051 = vpop.f32.mrf.mxu0
        %v1052 = vpop.f32.mrf.mxu0
        %v1053 = vadd.f32 %v932, %v1052
        %v1054 = vpop.f32.mrf.mxu0
        %1055 = vmatprep.mubr.bf16.mxu0 0
        %1056 = vmatmul.mubr.bf16.gmra.mxu0 %v975
        %v1057 = vpop.f32.mrf.mxu0
        %v1058 = vadd.f32 %v937, %v1057
        %v1059 = vpop.f32.mrf.mxu0
        %v1060 = vpop.f32.mrf.mxu0
        %v1061 = vadd.f32 %v940, %v1060
        %v1062 = vpop.f32.mrf.mxu0
        %1063 = vmatprep.mubr.bf16.mxu0 0
        %1064 = vmatmul.mubr.bf16.gmra.mxu0 %v978
        %v1065 = vpop.f32.mrf.mxu0
        %v1066 = vadd.f32 %v945, %v1065
        %v1067 = vpop.f32.mrf.mxu0
        %v1068 = vpop.f32.mrf.mxu0
        %v1069 = vadd.f32 %v948, %v1068
        %v1070 = vpop.f32.mrf.mxu0
        %1071 = vmatprep.mubr.bf16.mxu0 0
        %1072 = vmatmul.mubr.bf16.gmra.mxu0 %v981
        %v1073 = vpop.f32.mrf.mxu0
        %v1074 = vadd.f32 %v953, %v1073
        %v1075 = vpop.f32.mrf.mxu0
        %v1076 = vpop.f32.mrf.mxu0
        %v1077 = vadd.f32 %v956, %v1076
        %v1078 = vpop.f32.mrf.mxu0
        %1079 = vdwg.mxu0
        %v1080 = vmul.f32 %v728, %v1018
        %v1081 = vmul.f32 %v731, %v1021
        %v1082 = vmul.f32 %v736, %v1026
        %v1083 = vmul.f32 %v739, %v1029
        %v1084 = vmul.f32 %v744, %v1034
        %v1085 = vmul.f32 %v747, %v1037
        %v1086 = vmul.f32 %v752, %v1042
        %v1087 = vmul.f32 %v755, %v1045
        %v1088 = vmul.f32 %v760, %v1050
        %v1089 = vmul.f32 %v763, %v1053
        %v1090 = vmul.f32 %v768, %v1058
        %v1091 = vmul.f32 %v771, %v1061
        %v1092 = vmul.f32 %v776, %v1066
        %v1093 = vmul.f32 %v779, %v1069
        %v1094 = vmul.f32 %v784, %v1074
        %v1095 = vmul.f32 %v787, %v1077
        %v1096 = vadd.f32 %v1080, %v1081
        %v1097 = vadd.f32 %v1096, %v1082
        %v1098 = vadd.f32 %v1097, %v1083
        %v1099 = vadd.f32 %v1098, %v1084
        %v1100 = vadd.f32 %v1099, %v1085
        %v1101 = vadd.f32 %v1100, %v1086
        %v1102 = vadd.f32 %v1101, %v1087
        %v1103 = vadd.f32 %v1102, %v1088
        %v1104 = vadd.f32 %v1103, %v1089
        %v1105 = vadd.f32 %v1104, %v1090
        %v1106 = vadd.f32 %v1105, %v1091
        %v1107 = vadd.f32 %v1106, %v1092
        %v1108 = vadd.f32 %v1107, %v1093
        %v1109 = vadd.f32 %v1108, %v1094
        %v1110 = vadd.f32 %v1109, %v1095
        %v1111 = vrot.slane %v1110, 4
        %v1112 = vadd.f32 %v1110, %v1111
        %v1113 = vrot.slane %v1112, 2
        %v1114 = vadd.f32 %v1112, %v1113
        %v1115 = vrot.slane %v1114, 1
        %v1116 = vadd.f32 %v1114, %v1115
        %1117 = vst [vmem:[%s214] sm:$0x1] %v1116
        %s1118 = sand.u32 %s117, 1
        %s1119 = scalar_lea.sflag [#allocation3], %s1118
        %s1120 = sand.u32 %s117, 1
        %s1121 = scalar_lea.vmem [#allocation7], %s1120
        // Predicated region
        $region45: #{tpu_custom_call.1} parent=35 // pred_check
          %p1122 = pneg %p127
        $region46: #{tpu_custom_call.1} parent=35 // pred_check_branch
          %1124 = sbr.rel (%p1122) target = $region48
        $region47: #{tpu_custom_call.1} parent=35 // pred_region
          %s1126 = ssub.s32 16, 16
          %1127 = vsyncadd %s1119, %s1126
          %s1128 = smul.addr %s20, 16
          %s1129 = scalar_lea.hbm %s4, %s1128
          %s1131 = sshll.u32 %s1121, 4
          %s1132 = int_to_ptr.vmem [resolvable:$true] %s1131
          %1134 = dma.vmem_to_hbm [thread:$0]  %s1132, 16, %s1129, %s1119
        $region48: #{tpu_custom_call.1} parent=35 // pred_fallthru
          _
      $region36: #{tpu_custom_call.1} parent=5 // pred_fallthru
        _
      %p1135 = scmp.le.s32.totalorder 2, %s15
      // Predicated region
      $region49: #{tpu_custom_call.1} parent=5 // pred_check
        %p1136 = pneg %p1135
      $region50: #{tpu_custom_call.1} parent=5 // pred_check_branch
        %1138 = sbr.rel (%p1136) target = $region52
      $region51: #{tpu_custom_call.1} parent=5 // pred_region
        %s1139 = ssub.s32 %s15, 2
        // Predicated region
        $region53: #{tpu_custom_call.1} parent=51 // pred_check
          %p1140 = pneg %p133
        $region54: #{tpu_custom_call.1} parent=51 // pred_check_branch
          %1142 = sbr.rel (%p1140) target = $region56
        $region55: #{tpu_custom_call.1} parent=51 // pred_region
          %s1143 = sand.u32 %s118, 1
          %s1144 = scalar_lea.sflag [#allocation3], %s1143
          %s1145 = sand.u32 %s118, 1
          %s1146 = scalar_lea.vmem [#allocation7], %s1145
          %1147 = dma.done %s1144, 16
        $region56: #{tpu_custom_call.1} parent=51 // pred_fallthru
          _
      $region52: #{tpu_custom_call.1} parent=5 // pred_fallthru
        _
    $region6: #{tpu_custom_call.1} parent=1 // loop_footer
      %s19 = sadd.s32 1, %s15
    $region7: #{tpu_custom_call.1} parent=1 // loop_footer_branch
      %14 = sbr.rel target = $region3
    $region8: #{tpu_custom_call.1} parent=1 // loop_exit
      _
    %1148 = vsyncpa [#allocation3], 1
    %s1149 = scalar_lea.sflag [#allocation3], 1
    %1150 = vsyncpa %s1149, 1
    %1151 = vsyncpa [#allocation4], 1
    %s1152 = scalar_lea.sflag [#allocation4], 1
    %1153 = vsyncpa %s1152, 1
    %1154 = vsyncpa [#allocation6], 1

</llo_original>
